<compile_context>
chip_gen: v6e
topology: v6e:2x2x1
jax: 0.10.0
libtpu: 0.0.40
codegen_flags: <defaults>
</compile_context>

<pallas_src>
import jax
import jax.numpy as jnp
from jax import lax
from jax.experimental import pallas as pl
from jax.experimental.pallas import tpu as pltpu


LANE = 128  # TPU lane width; pad matmul minor dims to this for dense vregs.


def _round_up(x, m):
    return ((x + m - 1) // m) * m


def predictor_kernel(ids_ref, logits_ref, emb_ref, w1_ref, b1_ref,
                     w2_ref, b2_ref, out_ref):
    """One batch tile of the Predictor forward.

    ids_ref    : (TB, K)   int32 token ids
    logits_ref : (TB, K)   f32   per-token weights
    emb_ref    : (V, Ep)   bf16  embedding table (zero-padded to Ep lanes)
    w1_ref     : (Ep, Hp)  f32
    b1_ref     : (1, Hp)   f32
    w2_ref     : (Hp, Np)  f32
    b2_ref     : (1, Np)   f32
    out_ref    : (TB, Np)  f32   (only [:, :2] is meaningful)
    """
    tb, k = ids_ref.shape
    v = emb_ref.shape[0]

    # Fused "gather * logits, mean over K" as a weighted-count matrix (VPU).
    # Note: out-of-range ids (>= V) simply contribute a zero row, unlike
    # torch.nn.Embedding which would raise.
    vocab_iota = lax.broadcasted_iota(jnp.int32, (tb, v), 1)     # (TB, V)
    acc = jnp.zeros((tb, v), jnp.float32)
    for t in range(k):                    # k is small & static -> unrolled
        idc = ids_ref[:, t:t + 1]         # (TB, 1) int32
        lgc = logits_ref[:, t:t + 1]      # (TB, 1) f32
        acc = acc + jnp.where(idc == vocab_iota, lgc, 0.0)
    acc = acc * (1.0 / k)

    # Embedding gather + K-pooling in a single bf16 MXU matmul (f32 accum).
    pooled = jnp.dot(acc.astype(jnp.bfloat16), emb_ref[...],
                     preferred_element_type=jnp.float32)         # (TB, Ep)

    # linear1 + relu
    h = jnp.dot(pooled, w1_ref[...],
                preferred_element_type=jnp.float32) + b1_ref[...]
    h = jnp.maximum(h, 0.0)

    # linear2 (lane-dense padded output)
    out_ref[...] = jnp.dot(h, w2_ref[...],
                           preferred_element_type=jnp.float32) + b2_ref[...]


def predictor_forward(ids, logits, params, *, tb=8):
    """ids: (B, K) int ids; logits: (B, K, 1) or (B, K) float weights."""
    B, K = ids.shape
    ids2d = ids.astype(jnp.int32)
    logits2d = logits.reshape(B, K).astype(jnp.float32)

    emb = params["emb"]
    w1, b1 = params["w1"], params["b1"]
    w2, b2 = params["w2"], params["b2"]
    V, E = emb.shape
    H = w1.shape[1]
    N = w2.shape[1]

    # Pad matmul minor dims to full 128-lane tiles (zero fill => exact result)
    # and cast the table to bf16 for the (B,V)@(V,E) MXU matmul.
    Ep, Hp, Np = _round_up(E, LANE), _round_up(H, LANE), _round_up(N, LANE)
    emb_p = jnp.pad(emb, ((0, 0), (0, Ep - E))).astype(jnp.bfloat16)
    w1_p = jnp.pad(w1.astype(jnp.float32), ((0, Ep - E), (0, Hp - H)))
    b1_p = jnp.pad(b1.reshape(1, H).astype(jnp.float32), ((0, 0), (0, Hp - H)))
    w2_p = jnp.pad(w2.astype(jnp.float32), ((0, Hp - H), (0, Np - N)))
    b2_p = jnp.pad(b2.reshape(1, N).astype(jnp.float32), ((0, 0), (0, Np - N)))

    # Pad batch to a multiple of the batch tile (id 0 / logit 0 rows are inert).
    Bp = _round_up(B, tb)
    if Bp != B:
        ids2d = jnp.pad(ids2d, ((0, Bp - B), (0, 0)))
        logits2d = jnp.pad(logits2d, ((0, Bp - B), (0, 0)))
    nb = Bp // tb

    def nbytes(a):
        return a.size * a.dtype.itemsize

    # VMEM budget: resident weights + double-buffered per-step blocks + slack.
    weight_bytes = sum(nbytes(a) for a in (emb_p, w1_p, b1_p, w2_p, b2_p))
    block_bytes = 2 * (tb * K * 4) + tb * Np * 4
    vmem_limit = int(min(64 << 20,
                         max(32 << 20,
                             2 * (weight_bytes + block_bytes) + (4 << 20))))

    cost = pl.CostEstimate(
        flops=2 * Bp * (K * V + V * Ep + Ep * Hp + Hp * Np),
        transcendentals=0,
        bytes_accessed=(weight_bytes + nbytes(ids2d) + nbytes(logits2d)
                        + Bp * Np * 4),
    )

    out = pl.pallas_call(
        predictor_kernel,
        out_shape=jax.ShapeDtypeStruct((Bp, Np), jnp.float32),
        grid=(nb,),
        in_specs=[
            pl.BlockSpec((tb, K), lambda i: (i, 0)),      # ids     (blocked)
            pl.BlockSpec((tb, K), lambda i: (i, 0)),      # logits  (blocked)
            pl.BlockSpec((V, Ep), lambda i: (0, 0)),      # emb (bf16, resident)
            pl.BlockSpec((Ep, Hp), lambda i: (0, 0)),     # w1
            pl.BlockSpec((1, Hp), lambda i: (0, 0)),      # b1
            pl.BlockSpec((Hp, Np), lambda i: (0, 0)),     # w2
            pl.BlockSpec((1, Np), lambda i: (0, 0)),      # b2
        ],
        out_specs=pl.BlockSpec((tb, Np), lambda i: (i, 0)),
        compiler_params=pltpu.CompilerParams(
            dimension_semantics=("parallel",),
            vmem_limit_bytes=vmem_limit,
        ),
        cost_estimate=cost,
    )(ids2d, logits2d, emb_p, w1_p, b1_p, w2_p, b2_p)

    return out[:B, :N]


def predictor_reference(ids, logits, params):
    """Plain-JAX (f32) reference mirroring the PyTorch forward."""
    e = params["emb"][ids]                              # (B, K, E)
    e = e * logits                                      # (B, K, E)
    k = ids.shape[1]
    p = jnp.sum(e, axis=1) / k                          # (B, E)
    h = jnp.maximum(p @ params["w1"] + params["b1"], 0.0)
    return h @ params["w2"] + params["b2"]


if __name__ == "__main__":
    # Small, module-consistent shapes.
    VOCAB, EMB, HIDDEN = 32, 16, 32
    B, K = 16, 8                                        # k == K tokens/example

    key = jax.random.PRNGKey(0)
    k_emb, k_w1, k_b1, k_w2, k_b2, k_ids, k_log = jax.random.split(key, 7)

    params = {
        "emb": jax.random.normal(k_emb, (VOCAB, EMB), jnp.float32),
        "w1": jax.random.normal(k_w1, (EMB, HIDDEN), jnp.float32) * 0.1,
        "b1": jax.random.normal(k_b1, (1, HIDDEN), jnp.float32) * 0.1,
        "w2": jax.random.normal(k_w2, (HIDDEN, 2), jnp.float32) * 0.1,
        "b2": jax.random.normal(k_b2, (1, 2), jnp.float32) * 0.1,
    }

    ids = jax.random.randint(k_ids, (B, K), 0, VOCAB, dtype=jnp.int32)
    logits = jax.random.normal(k_log, (B, K, 1), jnp.float32)

    out = predictor_forward(ids, logits, params)
    out = jax.block_until_ready(out)

    ref = predictor_reference(ids, logits, params)
    assert out.shape == (B, 2)
    # bf16 embedding matmul -> ~1e-2-level deviation from the f32 reference;
    # well within the module-level tolerance used here.
    assert jnp.allclose(out, ref, rtol=5e-2, atol=5e-2), (out, ref)

    print("KERNEL_OK")
</pallas_src>

<mosaic_0001>
module attributes {stable_mosaic.version = 11 : i64} {
  func.func @predictor_kernel(%arg0: i32, %arg1: memref<8x8xi32, #tpu.memory_space<vmem>>, %arg2: memref<8x8xf32, #tpu.memory_space<vmem>>, %arg3: memref<32x128xbf16, #tpu.memory_space<vmem>>, %arg4: memref<128x128xf32, #tpu.memory_space<vmem>>, %arg5: memref<1x128xf32, #tpu.memory_space<vmem>>, %arg6: memref<128x128xf32, #tpu.memory_space<vmem>>, %arg7: memref<1x128xf32, #tpu.memory_space<vmem>>, %arg8: memref<8x128xf32, #tpu.memory_space<vmem>>) attributes {dimension_semantics = [#tpu.dimension_semantics<parallel>], iteration_bounds = array<i64: 2>, scalar_prefetch = 0 : i64, scratch_operands = 0 : i64, tpu.core_type = #tpu.core_type<tc>, window_params = [{transform_indices = @transform_0, window_bounds = array<i64: 8, 8>}, {transform_indices = @transform_1, window_bounds = array<i64: 8, 8>}, {pipeline_mode = #tpu.pipeline_mode<synchronous>, transform_indices = @transform_2, window_bounds = array<i64: 32, 128>}, {pipeline_mode = #tpu.pipeline_mode<synchronous>, transform_indices = @transform_3, window_bounds = array<i64: 128, 128>}, {pipeline_mode = #tpu.pipeline_mode<synchronous>, transform_indices = @transform_4, window_bounds = array<i64: 1, 128>}, {pipeline_mode = #tpu.pipeline_mode<synchronous>, transform_indices = @transform_5, window_bounds = array<i64: 128, 128>}, {pipeline_mode = #tpu.pipeline_mode<synchronous>, transform_indices = @transform_6, window_bounds = array<i64: 1, 128>}, {transform_indices = @transform_7, window_bounds = array<i64: 8, 128>}]} {
    %0 = tpu.iota {dimensions = array<i32: 1>} : vector<8x32xi32>
    %cst = arith.constant 0.000000e+00 : f32
    %1 = vector.broadcast %cst : f32 to vector<8x32xf32>
    %c0 = arith.constant 0 : index
    %c0_0 = arith.constant 0 : index
    %2 = vector.load %arg1[%c0, %c0_0] : memref<8x8xi32, #tpu.memory_space<vmem>>, vector<8x1xi32>
    %c0_1 = arith.constant 0 : index
    %c0_2 = arith.constant 0 : index
    %3 = vector.load %arg2[%c0_1, %c0_2] : memref<8x8xf32, #tpu.memory_space<vmem>>, vector<8x1xf32>
    %4 = vector.broadcast %2 : vector<8x1xi32> to vector<8x32xi32>
    %5 = arith.cmpi eq, %4, %0 : vector<8x32xi32>
    %cst_3 = arith.constant 0.000000e+00 : f32
    %6 = vector.shape_cast %3 : vector<8x1xf32> to vector<8x1xf32>
    %7 = vector.broadcast %6 : vector<8x1xf32> to vector<8x32xf32>
    %8 = vector.broadcast %cst_3 : f32 to vector<8x32xf32>
    %9 = arith.select %5, %7, %8 : vector<8x32xi1>, vector<8x32xf32>
    %10 = arith.addf %1, %9 : vector<8x32xf32>
    %c0_4 = arith.constant 0 : index
    %c1 = arith.constant 1 : index
    %11 = vector.load %arg1[%c0_4, %c1] : memref<8x8xi32, #tpu.memory_space<vmem>>, vector<8x1xi32>
    %c0_5 = arith.constant 0 : index
    %c1_6 = arith.constant 1 : index
    %12 = vector.load %arg2[%c0_5, %c1_6] : memref<8x8xf32, #tpu.memory_space<vmem>>, vector<8x1xf32>
    %13 = vector.broadcast %11 : vector<8x1xi32> to vector<8x32xi32>
    %14 = arith.cmpi eq, %13, %0 : vector<8x32xi32>
    %cst_7 = arith.constant 0.000000e+00 : f32
    %15 = vector.shape_cast %12 : vector<8x1xf32> to vector<8x1xf32>
    %16 = vector.broadcast %15 : vector<8x1xf32> to vector<8x32xf32>
    %17 = vector.broadcast %cst_7 : f32 to vector<8x32xf32>
    %18 = arith.select %14, %16, %17 : vector<8x32xi1>, vector<8x32xf32>
    %19 = arith.addf %10, %18 : vector<8x32xf32>
    %c0_8 = arith.constant 0 : index
    %c2 = arith.constant 2 : index
    %20 = vector.load %arg1[%c0_8, %c2] : memref<8x8xi32, #tpu.memory_space<vmem>>, vector<8x1xi32>
    %c0_9 = arith.constant 0 : index
    %c2_10 = arith.constant 2 : index
    %21 = vector.load %arg2[%c0_9, %c2_10] : memref<8x8xf32, #tpu.memory_space<vmem>>, vector<8x1xf32>
    %22 = vector.broadcast %20 : vector<8x1xi32> to vector<8x32xi32>
    %23 = arith.cmpi eq, %22, %0 : vector<8x32xi32>
    %cst_11 = arith.constant 0.000000e+00 : f32
    %24 = vector.shape_cast %21 : vector<8x1xf32> to vector<8x1xf32>
    %25 = vector.broadcast %24 : vector<8x1xf32> to vector<8x32xf32>
    %26 = vector.broadcast %cst_11 : f32 to vector<8x32xf32>
    %27 = arith.select %23, %25, %26 : vector<8x32xi1>, vector<8x32xf32>
    %28 = arith.addf %19, %27 : vector<8x32xf32>
    %c0_12 = arith.constant 0 : index
    %c3 = arith.constant 3 : index
    %29 = vector.load %arg1[%c0_12, %c3] : memref<8x8xi32, #tpu.memory_space<vmem>>, vector<8x1xi32>
    %c0_13 = arith.constant 0 : index
    %c3_14 = arith.constant 3 : index
    %30 = vector.load %arg2[%c0_13, %c3_14] : memref<8x8xf32, #tpu.memory_space<vmem>>, vector<8x1xf32>
    %31 = vector.broadcast %29 : vector<8x1xi32> to vector<8x32xi32>
    %32 = arith.cmpi eq, %31, %0 : vector<8x32xi32>
    %cst_15 = arith.constant 0.000000e+00 : f32
    %33 = vector.shape_cast %30 : vector<8x1xf32> to vector<8x1xf32>
    %34 = vector.broadcast %33 : vector<8x1xf32> to vector<8x32xf32>
    %35 = vector.broadcast %cst_15 : f32 to vector<8x32xf32>
    %36 = arith.select %32, %34, %35 : vector<8x32xi1>, vector<8x32xf32>
    %37 = arith.addf %28, %36 : vector<8x32xf32>
    %c0_16 = arith.constant 0 : index
    %c4 = arith.constant 4 : index
    %38 = vector.load %arg1[%c0_16, %c4] : memref<8x8xi32, #tpu.memory_space<vmem>>, vector<8x1xi32>
    %c0_17 = arith.constant 0 : index
    %c4_18 = arith.constant 4 : index
    %39 = vector.load %arg2[%c0_17, %c4_18] : memref<8x8xf32, #tpu.memory_space<vmem>>, vector<8x1xf32>
    %40 = vector.broadcast %38 : vector<8x1xi32> to vector<8x32xi32>
    %41 = arith.cmpi eq, %40, %0 : vector<8x32xi32>
    %cst_19 = arith.constant 0.000000e+00 : f32
    %42 = vector.shape_cast %39 : vector<8x1xf32> to vector<8x1xf32>
    %43 = vector.broadcast %42 : vector<8x1xf32> to vector<8x32xf32>
    %44 = vector.broadcast %cst_19 : f32 to vector<8x32xf32>
    %45 = arith.select %41, %43, %44 : vector<8x32xi1>, vector<8x32xf32>
    %46 = arith.addf %37, %45 : vector<8x32xf32>
    %c0_20 = arith.constant 0 : index
    %c5 = arith.constant 5 : index
    %47 = vector.load %arg1[%c0_20, %c5] : memref<8x8xi32, #tpu.memory_space<vmem>>, vector<8x1xi32>
    %c0_21 = arith.constant 0 : index
    %c5_22 = arith.constant 5 : index
    %48 = vector.load %arg2[%c0_21, %c5_22] : memref<8x8xf32, #tpu.memory_space<vmem>>, vector<8x1xf32>
    %49 = vector.broadcast %47 : vector<8x1xi32> to vector<8x32xi32>
    %50 = arith.cmpi eq, %49, %0 : vector<8x32xi32>
    %cst_23 = arith.constant 0.000000e+00 : f32
    %51 = vector.shape_cast %48 : vector<8x1xf32> to vector<8x1xf32>
    %52 = vector.broadcast %51 : vector<8x1xf32> to vector<8x32xf32>
    %53 = vector.broadcast %cst_23 : f32 to vector<8x32xf32>
    %54 = arith.select %50, %52, %53 : vector<8x32xi1>, vector<8x32xf32>
    %55 = arith.addf %46, %54 : vector<8x32xf32>
    %c0_24 = arith.constant 0 : index
    %c6 = arith.constant 6 : index
    %56 = vector.load %arg1[%c0_24, %c6] : memref<8x8xi32, #tpu.memory_space<vmem>>, vector<8x1xi32>
    %c0_25 = arith.constant 0 : index
    %c6_26 = arith.constant 6 : index
    %57 = vector.load %arg2[%c0_25, %c6_26] : memref<8x8xf32, #tpu.memory_space<vmem>>, vector<8x1xf32>
    %58 = vector.broadcast %56 : vector<8x1xi32> to vector<8x32xi32>
    %59 = arith.cmpi eq, %58, %0 : vector<8x32xi32>
    %cst_27 = arith.constant 0.000000e+00 : f32
    %60 = vector.shape_cast %57 : vector<8x1xf32> to vector<8x1xf32>
    %61 = vector.broadcast %60 : vector<8x1xf32> to vector<8x32xf32>
    %62 = vector.broadcast %cst_27 : f32 to vector<8x32xf32>
    %63 = arith.select %59, %61, %62 : vector<8x32xi1>, vector<8x32xf32>
    %64 = arith.addf %55, %63 : vector<8x32xf32>
    %c0_28 = arith.constant 0 : index
    %c7 = arith.constant 7 : index
    %65 = vector.load %arg1[%c0_28, %c7] : memref<8x8xi32, #tpu.memory_space<vmem>>, vector<8x1xi32>
    %c0_29 = arith.constant 0 : index
    %c7_30 = arith.constant 7 : index
    %66 = vector.load %arg2[%c0_29, %c7_30] : memref<8x8xf32, #tpu.memory_space<vmem>>, vector<8x1xf32>
    %67 = vector.broadcast %65 : vector<8x1xi32> to vector<8x32xi32>
    %68 = arith.cmpi eq, %67, %0 : vector<8x32xi32>
    %cst_31 = arith.constant 0.000000e+00 : f32
    %69 = vector.shape_cast %66 : vector<8x1xf32> to vector<8x1xf32>
    %70 = vector.broadcast %69 : vector<8x1xf32> to vector<8x32xf32>
    %71 = vector.broadcast %cst_31 : f32 to vector<8x32xf32>
    %72 = arith.select %68, %70, %71 : vector<8x32xi1>, vector<8x32xf32>
    %73 = arith.addf %64, %72 : vector<8x32xf32>
    %cst_32 = arith.constant 1.250000e-01 : f32
    %74 = vector.broadcast %cst_32 : f32 to vector<8x32xf32>
    %75 = arith.mulf %73, %74 : vector<8x32xf32>
    %76 = arith.truncf %75 : vector<8x32xf32> to vector<8x32xbf16>
    %c0_33 = arith.constant 0 : index
    %c0_34 = arith.constant 0 : index
    %77 = vector.load %arg3[%c0_33, %c0_34] : memref<32x128xbf16, #tpu.memory_space<vmem>>, vector<32x128xbf16>
    %cst_35 = arith.constant dense<0.000000e+00> : vector<8x128xf32>
    %78 = tpu.matmul %76, %77, %cst_35 {dimension_numbers = #tpu.dot_dimension_numbers<[1], [0], [0], [1], [0, 0, 1, 1], [], []>} : vector<8x32xbf16>, vector<32x128xbf16>, vector<8x128xf32> -> vector<8x128xf32>
    %c0_36 = arith.constant 0 : index
    %c0_37 = arith.constant 0 : index
    %79 = vector.load %arg4[%c0_36, %c0_37] : memref<128x128xf32, #tpu.memory_space<vmem>>, vector<128x128xf32>
    %cst_38 = arith.constant dense<0.000000e+00> : vector<8x128xf32>
    %80 = tpu.matmul %78, %79, %cst_38 {dimension_numbers = #tpu.dot_dimension_numbers<[1], [0], [0], [1], [0, 0, 1, 1], [], []>} : vector<8x128xf32>, vector<128x128xf32>, vector<8x128xf32> -> vector<8x128xf32>
    %c0_39 = arith.constant 0 : index
    %c0_40 = arith.constant 0 : index
    %81 = vector.load %arg5[%c0_39, %c0_40] : memref<1x128xf32, #tpu.memory_space<vmem>>, vector<1x128xf32>
    %82 = vector.broadcast %81 : vector<1x128xf32> to vector<8x128xf32>
    %83 = arith.addf %80, %82 : vector<8x128xf32>
    %cst_41 = arith.constant 0.000000e+00 : f32
    %84 = vector.broadcast %cst_41 : f32 to vector<8x128xf32>
    %85 = arith.maximumf %83, %84 : vector<8x128xf32>
    %c0_42 = arith.constant 0 : index
    %c0_43 = arith.constant 0 : index
    %86 = vector.load %arg6[%c0_42, %c0_43] : memref<128x128xf32, #tpu.memory_space<vmem>>, vector<128x128xf32>
    %cst_44 = arith.constant dense<0.000000e+00> : vector<8x128xf32>
    %87 = tpu.matmul %85, %86, %cst_44 {dimension_numbers = #tpu.dot_dimension_numbers<[1], [0], [0], [1], [0, 0, 1, 1], [], []>} : vector<8x128xf32>, vector<128x128xf32>, vector<8x128xf32> -> vector<8x128xf32>
    %c0_45 = arith.constant 0 : index
    %c0_46 = arith.constant 0 : index
    %88 = vector.load %arg7[%c0_45, %c0_46] : memref<1x128xf32, #tpu.memory_space<vmem>>, vector<1x128xf32>
    %89 = vector.broadcast %88 : vector<1x128xf32> to vector<8x128xf32>
    %90 = arith.addf %87, %89 : vector<8x128xf32>
    %c0_47 = arith.constant 0 : index
    %c0_48 = arith.constant 0 : index
    %91 = vector.load %arg8[%c0_47, %c0_48] : memref<8x128xf32, #tpu.memory_space<vmem>>, vector<8x128xf32>
    tpu.vector_store %arg8[%c0_47, %c0_48], %90 {strides = array<i32>} : memref<8x128xf32, #tpu.memory_space<vmem>>, vector<8x128xf32>,
    return
  }
  func.func @transform_0(%arg0: i32) -> (i32, i32) {
    %c0_i32 = arith.constant 0 : i32
    %c0_i32_0 = arith.constant 0 : i32
    return %arg0, %c0_i32 : i32, i32
  }
  func.func @transform_1(%arg0: i32) -> (i32, i32) {
    %c0_i32 = arith.constant 0 : i32
    %c0_i32_0 = arith.constant 0 : i32
    return %arg0, %c0_i32 : i32, i32
  }
  func.func @transform_2(%arg0: i32) -> (i32, i32) {
    %c0_i32 = arith.constant 0 : i32
    %c0_i32_0 = arith.constant 0 : i32
    %c0_i32_1 = arith.constant 0 : i32
    return %c0_i32, %c0_i32_0 : i32, i32
  }
  func.func @transform_3(%arg0: i32) -> (i32, i32) {
    %c0_i32 = arith.constant 0 : i32
    %c0_i32_0 = arith.constant 0 : i32
    %c0_i32_1 = arith.constant 0 : i32
    return %c0_i32, %c0_i32_0 : i32, i32
  }
  func.func @transform_4(%arg0: i32) -> (i32, i32) {
    %c0_i32 = arith.constant 0 : i32
    %c0_i32_0 = arith.constant 0 : i32
    %c0_i32_1 = arith.constant 0 : i32
    return %c0_i32, %c0_i32_0 : i32, i32
  }
  func.func @transform_5(%arg0: i32) -> (i32, i32) {
    %c0_i32 = arith.constant 0 : i32
    %c0_i32_0 = arith.constant 0 : i32
    %c0_i32_1 = arith.constant 0 : i32
    return %c0_i32, %c0_i32_0 : i32, i32
  }
  func.func @transform_6(%arg0: i32) -> (i32, i32) {
    %c0_i32 = arith.constant 0 : i32
    %c0_i32_0 = arith.constant 0 : i32
    %c0_i32_1 = arith.constant 0 : i32
    return %c0_i32, %c0_i32_0 : i32, i32
  }
  func.func @transform_7(%arg0: i32) -> (i32, i32) {
    %c0_i32 = arith.constant 0 : i32
    %c0_i32_0 = arith.constant 0 : i32
    return %arg0, %c0_i32 : i32, i32
  }
}

</mosaic_0001>

<llo_original>
// kernel: tpu_custom_call.1
$region0: #{tpu_custom_call.1}
  #allocation0 [shape = 'u32[]', space=smem, size = 0x4, offset = 0x4, fixed_abs, tag = 'smem constant byte address 0x4 - core index']
  #allocation1 [shape = 'u32[144,128]{1,0:T(1,128)}', space=vmem, size = 0x12000, scoped, tag = 'internal scratch']
  %s0 = inlined_call_operand.vmem [shape: s32[16,8], index: 0, kind: input, shape index: {}]
  %s1 = inlined_call_operand.vmem [shape: f32[16,8], index: 1, kind: input, shape index: {}]
  %s2 = inlined_call_operand.vmem [shape: bf16[32,128], index: 2, kind: input, shape index: {}]
  %s3 = inlined_call_operand.hbm [shape: f32[128,128], index: 3, kind: input, shape index: {}]
  %s4 = inlined_call_operand.vmem [shape: f32[1,128], index: 4, kind: input, shape index: {}]
  %s5 = inlined_call_operand.hbm [shape: f32[128,128], index: 5, kind: input, shape index: {}]
  %s6 = inlined_call_operand.vmem [shape: f32[1,128], index: 6, kind: input, shape index: {}]
  %s7 = inlined_call_operand.hbm [shape: f32[16,128], index: 7, kind: output, shape index: {}]
  %s8 = sld [smem:[#allocation0]]
  $region69: #{tpu_custom_call.1} parent=0
    _
  %s10 = ssub.s32 1, %s8
  %s11 = scalar_select 0, %s10, %s8
  $region1: #{tpu_custom_call.1} parent=0
    #allocation2 [shape = 'u8[65536]{0}', space=vmem, size = 0x10000, scoped, tag = 'input window, operand 3, single buffered']
    #allocation3 [shape = 's32[2]{0}', space=sflag, size = 0x8, scoped, tag = 'scoped memory for tpu_custom_call.1']
    #allocation4 [shape = 's32[2]{0}', space=sflag, size = 0x8, scoped, tag = 'scoped memory for tpu_custom_call.1']
    #allocation5 [shape = 'u8[65536]{0}', space=vmem, size = 0x10000, scoped, tag = 'input window, operand 5, single buffered']
    #allocation6 [shape = 's32[1]{0}', space=sflag, size = 0x4, scoped, tag = 'scoped memory for tpu_custom_call.1']
    #allocation7 [shape = 'u8[8192]{0}', space=vmem, size = 0x2000, scoped, tag = 'output window, operand 0']
    %12 = vsyncpa [#allocation3], 0
    %13 = vsyncpa [#allocation6], 0
    %14 = vsyncpa [#allocation4], 0
    %s15 = scalar_lea.sflag [#allocation4], 1
    %16 = vsyncpa %s15, 0
    loop: start=0, step=1, limit=4
    $region2: #{tpu_custom_call.1} parent=1 // loop_pre_header
      _
    $region3: #{tpu_custom_call.1} parent=1 // loop_header
      %s18 = sphi 0, %s22
      %p19 = scmp.ge.s32.totalorder %s18, 4
      %s28 = sphi 0, %s30
      %s31 = sphi 0, %s28
      %s32 = sphi 0, %s31
      %s48 = sphi 0, %s32
      %s54 = sphi 0, %s56
      %s57 = sphi 0, %s54
      %s58 = sphi 0, %s57
      %s74 = sphi 0, %s58
      %s78 = sphi 0, %s78
      %s80 = sphi 0, %s78
      %s81 = sphi 0, %s80
      %s95 = sphi 0, %s81
      %s99 = sphi 0, %s99
      %s101 = sphi 0, %s99
      %s102 = sphi 0, %s101
      %s116 = sphi 0, %s102
      %s120 = sphi 0, %s120
      %s122 = sphi 0, %s120
      %s123 = sphi 0, %s122
      %s137 = sphi 0, %s123
      %s141 = sphi 0, %s141
      %s143 = sphi 0, %s141
      %s144 = sphi 0, %s143
      %s158 = sphi 0, %s144
      %s162 = sphi 0, %s162
      %s164 = sphi 0, %s162
      %s165 = sphi 0, %s164
      %s179 = sphi 0, %s165
      %s185 = sphi 0, %s187
      %s188 = sphi 0, %s185
      %s189 = sphi 0, %s188
      %s205 = sphi 0, %s189
    $region4: #{tpu_custom_call.1} parent=1 // loop_header_branch
      %21 = sbr.rel (%p19) target = $region8
    $region5: #{tpu_custom_call.1} parent=1 // loop_body
      %s23 = ssub.s32 %s18, 1
      %s24 = ssub.s32 %s18, 2
      %s25 = sadd.s32 %s18, 1
      %s26 = ssub.s32 %s18, %s25
      %p27 = scmp.eq.s32.totalorder %s26, 0
      %s29 = sadd.s32 %s28, 1
      %s30 = scalar_select %p27, %s28, %s29
      %p33 = pneg %p27
      %p34 = scmp.eq.s32.totalorder %s18, 1
      %p35 = por %p33, %p34
      %p36 = scmp.ne.s32.totalorder %s28, %s31
      %p37 = scmp.eq.s32.totalorder %s18, 0
      %p38 = por %p36, %p37
      %p39 = scmp.ne.s32.totalorder %s28, %s31
      %p40 = scmp.eq.s32.totalorder %s23, 1
      %p41 = por %p39, %p40
      %p42 = scmp.ne.s32.totalorder %s31, %s32
      %p43 = scmp.eq.s32.totalorder %s23, 0
      %p44 = por %p42, %p43
      %p45 = scmp.ne.s32.totalorder %s31, %s32
      %p46 = scmp.eq.s32.totalorder %s24, 1
      %p47 = por %p45, %p46
      %p49 = scmp.ne.s32.totalorder %s32, %s48
      %p50 = scmp.eq.s32.totalorder %s24, 0
      %p51 = por %p49, %p50
      %s52 = ssub.s32 %s18, %s25
      %p53 = scmp.eq.s32.totalorder %s52, 0
      %s55 = sadd.s32 %s54, 1
      %s56 = scalar_select %p53, %s54, %s55
      %p59 = pneg %p53
      %p60 = scmp.eq.s32.totalorder %s18, 1
      %p61 = por %p59, %p60
      %p62 = scmp.ne.s32.totalorder %s54, %s57
      %p63 = scmp.eq.s32.totalorder %s18, 0
      %p64 = por %p62, %p63
      %p65 = scmp.ne.s32.totalorder %s54, %s57
      %p66 = scmp.eq.s32.totalorder %s23, 1
      %p67 = por %p65, %p66
      %p68 = scmp.ne.s32.totalorder %s57, %s58
      %p69 = scmp.eq.s32.totalorder %s23, 0
      %p70 = por %p68, %p69
      %p71 = scmp.ne.s32.totalorder %s57, %s58
      %p72 = scmp.eq.s32.totalorder %s24, 1
      %p73 = por %p71, %p72
      %p75 = scmp.ne.s32.totalorder %s58, %s74
      %p76 = scmp.eq.s32.totalorder %s24, 0
      %p77 = por %p75, %p76
      %s79 = sadd.s32 %s78, 1
      %p82 = scmp.eq.s32.totalorder %s18, 1
      %p83 = scmp.ne.s32.totalorder %s78, %s80
      %p84 = scmp.eq.s32.totalorder %s18, 0
      %p85 = por %p83, %p84
      %p86 = scmp.ne.s32.totalorder %s78, %s80
      %p87 = scmp.eq.s32.totalorder %s23, 1
      %p88 = por %p86, %p87
      %p89 = scmp.ne.s32.totalorder %s80, %s81
      %p90 = scmp.eq.s32.totalorder %s23, 0
      %p91 = por %p89, %p90
      %p92 = scmp.ne.s32.totalorder %s80, %s81
      %p93 = scmp.eq.s32.totalorder %s24, 1
      %p94 = por %p92, %p93
      %p96 = scmp.ne.s32.totalorder %s81, %s95
      %p97 = scmp.eq.s32.totalorder %s24, 0
      %p98 = por %p96, %p97
      %s100 = sadd.s32 %s99, 1
      %p103 = scmp.eq.s32.totalorder %s18, 1
      %p104 = scmp.ne.s32.totalorder %s99, %s101
      %p105 = scmp.eq.s32.totalorder %s18, 0
      %p106 = por %p104, %p105
      %p107 = scmp.ne.s32.totalorder %s99, %s101
      %p108 = scmp.eq.s32.totalorder %s23, 1
      %p109 = por %p107, %p108
      %p110 = scmp.ne.s32.totalorder %s101, %s102
      %p111 = scmp.eq.s32.totalorder %s23, 0
      %p112 = por %p110, %p111
      %p113 = scmp.ne.s32.totalorder %s101, %s102
      %p114 = scmp.eq.s32.totalorder %s24, 1
      %p115 = por %p113, %p114
      %p117 = scmp.ne.s32.totalorder %s102, %s116
      %p118 = scmp.eq.s32.totalorder %s24, 0
      %p119 = por %p117, %p118
      %s121 = sadd.s32 %s120, 1
      %p124 = scmp.eq.s32.totalorder %s18, 1
      %p125 = scmp.ne.s32.totalorder %s120, %s122
      %p126 = scmp.eq.s32.totalorder %s18, 0
      %p127 = por %p125, %p126
      %p128 = scmp.ne.s32.totalorder %s120, %s122
      %p129 = scmp.eq.s32.totalorder %s23, 1
      %p130 = por %p128, %p129
      %p131 = scmp.ne.s32.totalorder %s122, %s123
      %p132 = scmp.eq.s32.totalorder %s23, 0
      %p133 = por %p131, %p132
      %p134 = scmp.ne.s32.totalorder %s122, %s123
      %p135 = scmp.eq.s32.totalorder %s24, 1
      %p136 = por %p134, %p135
      %p138 = scmp.ne.s32.totalorder %s123, %s137
      %p139 = scmp.eq.s32.totalorder %s24, 0
      %p140 = por %p138, %p139
      %s142 = sadd.s32 %s141, 1
      %p145 = scmp.eq.s32.totalorder %s18, 1
      %p146 = scmp.ne.s32.totalorder %s141, %s143
      %p147 = scmp.eq.s32.totalorder %s18, 0
      %p148 = por %p146, %p147
      %p149 = scmp.ne.s32.totalorder %s141, %s143
      %p150 = scmp.eq.s32.totalorder %s23, 1
      %p151 = por %p149, %p150
      %p152 = scmp.ne.s32.totalorder %s143, %s144
      %p153 = scmp.eq.s32.totalorder %s23, 0
      %p154 = por %p152, %p153
      %p155 = scmp.ne.s32.totalorder %s143, %s144
      %p156 = scmp.eq.s32.totalorder %s24, 1
      %p157 = por %p155, %p156
      %p159 = scmp.ne.s32.totalorder %s144, %s158
      %p160 = scmp.eq.s32.totalorder %s24, 0
      %p161 = por %p159, %p160
      %s163 = sadd.s32 %s162, 1
      %p166 = scmp.eq.s32.totalorder %s18, 1
      %p167 = scmp.ne.s32.totalorder %s162, %s164
      %p168 = scmp.eq.s32.totalorder %s18, 0
      %p169 = por %p167, %p168
      %p170 = scmp.ne.s32.totalorder %s162, %s164
      %p171 = scmp.eq.s32.totalorder %s23, 1
      %p172 = por %p170, %p171
      %p173 = scmp.ne.s32.totalorder %s164, %s165
      %p174 = scmp.eq.s32.totalorder %s23, 0
      %p175 = por %p173, %p174
      %p176 = scmp.ne.s32.totalorder %s164, %s165
      %p177 = scmp.eq.s32.totalorder %s24, 1
      %p178 = por %p176, %p177
      %p180 = scmp.ne.s32.totalorder %s165, %s179
      %p181 = scmp.eq.s32.totalorder %s24, 0
      %p182 = por %p180, %p181
      %s183 = ssub.s32 %s18, %s25
      %p184 = scmp.eq.s32.totalorder %s183, 0
      %s186 = sadd.s32 %s185, 1
      %s187 = scalar_select %p184, %s185, %s186
      %p190 = pneg %p184
      %p191 = scmp.eq.s32.totalorder %s18, 1
      %p192 = por %p190, %p191
      %p193 = scmp.ne.s32.totalorder %s185, %s188
      %p194 = scmp.eq.s32.totalorder %s18, 0
      %p195 = por %p193, %p194
      %p196 = scmp.ne.s32.totalorder %s185, %s188
      %p197 = scmp.eq.s32.totalorder %s23, 1
      %p198 = por %p196, %p197
      %p199 = scmp.ne.s32.totalorder %s188, %s189
      %p200 = scmp.eq.s32.totalorder %s23, 0
      %p201 = por %p199, %p200
      %p202 = scmp.ne.s32.totalorder %s188, %s189
      %p203 = scmp.eq.s32.totalorder %s24, 1
      %p204 = por %p202, %p203
      %p206 = scmp.ne.s32.totalorder %s189, %s205
      %p207 = scmp.eq.s32.totalorder %s24, 0
      %p208 = por %p206, %p207
      %p209 = scmp.le.s32.totalorder 1, %s18
      %p210 = scmp.lt.s32.totalorder %s18, 3
      %p211 = pnand %p209, %p210
      %p212 = pneg %p211
      // Predicated region
      $region9: #{tpu_custom_call.1} parent=5 // pred_check
        _
      $region10: #{tpu_custom_call.1} parent=5 // pred_check_branch
        %214 = sbr.rel (%p211) target = $region12
      $region11: #{tpu_custom_call.1} parent=5 // pred_region
        %s215 = ssub.s32 %s18, 1
        // Predicated region
        $region13: #{tpu_custom_call.1} parent=11 // pred_check
          %p216 = pneg %p91
        $region14: #{tpu_custom_call.1} parent=11 // pred_check_branch
          %218 = sbr.rel (%p216) target = $region16
        $region15: #{tpu_custom_call.1} parent=11 // pred_region
          _
        $region16: #{tpu_custom_call.1} parent=11 // pred_fallthru
          _
        // Predicated region
        $region17: #{tpu_custom_call.1} parent=11 // pred_check
          %p219 = pneg %p112
        $region18: #{tpu_custom_call.1} parent=11 // pred_check_branch
          %221 = sbr.rel (%p219) target = $region20
        $region19: #{tpu_custom_call.1} parent=11 // pred_region
          %s223 = ssub.s32 2048, 2048
          %224 = vsyncadd [#allocation3], %s223
          %s225 = sshll.u32 [#allocation2], 4
          %s226 = int_to_ptr.vmem [resolvable:$true] %s225
          %231 = dma.hbm_to_vmem [thread:$0]  %s3, 2048, %s226, [#allocation3], 128, 128, 8
        $region20: #{tpu_custom_call.1} parent=11 // pred_fallthru
          _
        // Predicated region
        $region21: #{tpu_custom_call.1} parent=11 // pred_check
          %p232 = pneg %p133
        $region22: #{tpu_custom_call.1} parent=11 // pred_check_branch
          %234 = sbr.rel (%p232) target = $region24
        $region23: #{tpu_custom_call.1} parent=11 // pred_region
          _
        $region24: #{tpu_custom_call.1} parent=11 // pred_fallthru
          _
        // Predicated region
        $region25: #{tpu_custom_call.1} parent=11 // pred_check
          %p235 = pneg %p154
        $region26: #{tpu_custom_call.1} parent=11 // pred_check_branch
          %237 = sbr.rel (%p235) target = $region28
        $region27: #{tpu_custom_call.1} parent=11 // pred_region
          %s239 = ssub.s32 2048, 2048
          %240 = vsyncadd [#allocation6], %s239
          %s241 = sshll.u32 [#allocation5], 4
          %s242 = int_to_ptr.vmem [resolvable:$true] %s241
          %247 = dma.hbm_to_vmem [thread:$0]  %s5, 2048, %s242, [#allocation6], 128, 128, 8
        $region28: #{tpu_custom_call.1} parent=11 // pred_fallthru
          _
        // Predicated region
        $region29: #{tpu_custom_call.1} parent=11 // pred_check
          %p248 = pneg %p175
        $region30: #{tpu_custom_call.1} parent=11 // pred_check_branch
          %250 = sbr.rel (%p248) target = $region32
        $region31: #{tpu_custom_call.1} parent=11 // pred_region
          _
        $region32: #{tpu_custom_call.1} parent=11 // pred_fallthru
          _
      $region12: #{tpu_custom_call.1} parent=5 // pred_fallthru
        _
      %p251 = scmp.lt.s32.totalorder %s18, 2
      // Predicated region
      $region33: #{tpu_custom_call.1} parent=5 // pred_check
        %p252 = pneg %p251
      $region34: #{tpu_custom_call.1} parent=5 // pred_check_branch
        %254 = sbr.rel (%p252) target = $region36
      $region35: #{tpu_custom_call.1} parent=5 // pred_region
        // Predicated region
        $region37: #{tpu_custom_call.1} parent=35 // pred_check
          %p255 = pneg %p38
        $region38: #{tpu_custom_call.1} parent=35 // pred_check_branch
          %257 = sbr.rel (%p255) target = $region40
        $region39: #{tpu_custom_call.1} parent=35 // pred_region
          %p258 = scmp.lt.s32.totalorder %s18, 1
          %s259 = scalar_select %p258, %s18, 1
          %s260 = smul.addr %s259, 8
          %s261 = scalar_lea.vmem %s0, %s260
        $region40: #{tpu_custom_call.1} parent=35 // pred_fallthru
          _
        // Predicated region
        $region41: #{tpu_custom_call.1} parent=35 // pred_check
          %p262 = pneg %p64
        $region42: #{tpu_custom_call.1} parent=35 // pred_check_branch
          %264 = sbr.rel (%p262) target = $region44
        $region43: #{tpu_custom_call.1} parent=35 // pred_region
          %p265 = scmp.lt.s32.totalorder %s18, 1
          %s266 = scalar_select %p265, %s18, 1
          %s267 = smul.addr %s266, 8
          %s268 = scalar_lea.vmem %s1, %s267
        $region44: #{tpu_custom_call.1} parent=35 // pred_fallthru
          _
      $region36: #{tpu_custom_call.1} parent=5 // pred_fallthru
        _
      %p269 = scmp.le.s32.totalorder 1, %s18
      %p270 = scmp.lt.s32.totalorder %s18, 3
      %p271 = pnand %p269, %p270
      %p272 = pneg %p271
      // Predicated region
      $region45: #{tpu_custom_call.1} parent=5 // pred_check
        _
      $region46: #{tpu_custom_call.1} parent=5 // pred_check_branch
        %274 = sbr.rel (%p271) target = $region48
      $region47: #{tpu_custom_call.1} parent=5 // pred_region
        %s275 = ssub.s32 %s18, 1
        // Predicated region
        $region49: #{tpu_custom_call.1} parent=47 // pred_check
          %p276 = pneg %p112
        $region50: #{tpu_custom_call.1} parent=47 // pred_check_branch
          %278 = sbr.rel (%p276) target = $region52
        $region51: #{tpu_custom_call.1} parent=47 // pred_region
          %279 = dma.done [#allocation3], 2048
        $region52: #{tpu_custom_call.1} parent=47 // pred_fallthru
          _
        // Predicated region
        $region53: #{tpu_custom_call.1} parent=47 // pred_check
          %p280 = pneg %p154
        $region54: #{tpu_custom_call.1} parent=47 // pred_check_branch
          %282 = sbr.rel (%p280) target = $region56
        $region55: #{tpu_custom_call.1} parent=47 // pred_region
          %283 = dma.done [#allocation6], 2048
        $region56: #{tpu_custom_call.1} parent=47 // pred_fallthru
          _
        %p284 = scmp.lt.s32.totalorder %s23, 1
        %s285 = scalar_select %p284, %s23, 1
        %s286 = smul.addr %s285, 8
        %s287 = scalar_lea.vmem %s0, %s286
        %p288 = pneg %p44
        %p289 = pneg %p41
        %p290 = scmp.lt.s32.totalorder %s23, 1
        %s291 = scalar_select %p290, %s23, 1
        %s292 = smul.addr %s291, 8
        %s293 = scalar_lea.vmem %s1, %s292
        %p294 = pneg %p70
        %p295 = pneg %p67
        %p296 = pneg %p91
        %p297 = pneg %p88
        %p298 = pneg %p112
        %p299 = pneg %p109
        %p300 = pneg %p133
        %p301 = pneg %p130
        %p302 = pneg %p154
        %p303 = pneg %p151
        %p304 = pneg %p175
        %p305 = pneg %p172
        %p306 = pneg %p201
        %p307 = pneg %p198
        %s308 = sand.u32 %s188, 1
        %s309 = scalar_lea.sflag [#allocation4], %s308
        %s310 = sand.u32 %s188, 1
        %s311 = smul.addr %s310, 8
        %s312 = scalar_lea.vmem [#allocation7], %s311
        %p313 = scmp.lt.s32.totalorder %s23, 1
        %s314 = scalar_select %p313, %s23, 1
        %s315 = smul.addr %s314, 8
        %s316 = scalar_lea.vmem %s0, %s315
        %p317 = scmp.lt.s32.totalorder %s23, 1
        %s318 = scalar_select %p317, %s23, 1
        %s319 = smul.addr %s318, 8
        %s320 = scalar_lea.vmem %s1, %s319
        %v322 = vlaneseq
        %v323 = vand.u32 %v322, 127
        %v324 = vld [vmem:[%s316] sm:$0xff]
        %v325 = vld [vmem:[%s320] sm:$0xff]
        %326 = vset.pattern.permute.xlu0 0
        %327 = vperm.xlu0 %326, %v324
        %v328 = vpop.permute.xlu0 %327
        %vm329 = vcmp.eq.s32.totalorder %v328, %v323
        %331 = vset.pattern.permute.xlu0 0
        %332 = vperm.xlu0 %331, %v325
        %v333 = vpop.permute.xlu0 %332
        %v335 = vsel %vm329, %v333, 0.0
        %v336 = vadd.f32 %v335, 0.0
        %337 = vset.pattern.permute.xlu0 1
        %338 = vperm.xlu0 %337, %v324
        %v339 = vpop.permute.xlu0 %338
        %vm340 = vcmp.eq.s32.totalorder %v339, %v323
        %341 = vset.pattern.permute.xlu0 1
        %342 = vperm.xlu0 %341, %v325
        %v343 = vpop.permute.xlu0 %342
        %v345 = vsel %vm340, %v343, 0.0
        %v346 = vadd.f32 %v336, %v345
        %347 = vset.pattern.permute.xlu0 2
        %348 = vperm.xlu0 %347, %v324
        %v349 = vpop.permute.xlu0 %348
        %vm350 = vcmp.eq.s32.totalorder %v349, %v323
        %351 = vset.pattern.permute.xlu0 2
        %352 = vperm.xlu0 %351, %v325
        %v353 = vpop.permute.xlu0 %352
        %v355 = vsel %vm350, %v353, 0.0
        %v356 = vadd.f32 %v346, %v355
        %357 = vset.pattern.permute.xlu0 3
        %358 = vperm.xlu0 %357, %v324
        %v359 = vpop.permute.xlu0 %358
        %vm360 = vcmp.eq.s32.totalorder %v359, %v323
        %361 = vset.pattern.permute.xlu0 3
        %362 = vperm.xlu0 %361, %v325
        %v363 = vpop.permute.xlu0 %362
        %v365 = vsel %vm360, %v363, 0.0
        %v366 = vadd.f32 %v356, %v365
        %367 = vset.pattern.permute.xlu0 4
        %368 = vperm.xlu0 %367, %v324
        %v369 = vpop.permute.xlu0 %368
        %vm370 = vcmp.eq.s32.totalorder %v369, %v323
        %371 = vset.pattern.permute.xlu0 4
        %372 = vperm.xlu0 %371, %v325
        %v373 = vpop.permute.xlu0 %372
        %v375 = vsel %vm370, %v373, 0.0
        %v376 = vadd.f32 %v366, %v375
        %377 = vset.pattern.permute.xlu0 5
        %378 = vperm.xlu0 %377, %v324
        %v379 = vpop.permute.xlu0 %378
        %vm380 = vcmp.eq.s32.totalorder %v379, %v323
        %381 = vset.pattern.permute.xlu0 5
        %382 = vperm.xlu0 %381, %v325
        %v383 = vpop.permute.xlu0 %382
        %v385 = vsel %vm380, %v383, 0.0
        %v386 = vadd.f32 %v376, %v385
        %387 = vset.pattern.permute.xlu0 6
        %388 = vperm.xlu0 %387, %v324
        %v389 = vpop.permute.xlu0 %388
        %vm390 = vcmp.eq.s32.totalorder %v389, %v323
        %391 = vset.pattern.permute.xlu0 6
        %392 = vperm.xlu0 %391, %v325
        %v393 = vpop.permute.xlu0 %392
        %v395 = vsel %vm390, %v393, 0.0
        %v396 = vadd.f32 %v386, %v395
        %397 = vset.pattern.permute.xlu0 7
        %398 = vperm.xlu0 %397, %v324
        %v399 = vpop.permute.xlu0 %398
        %vm400 = vcmp.eq.s32.totalorder %v399, %v323
        %401 = vset.pattern.permute.xlu0 7
        %402 = vperm.xlu0 %401, %v325
        %v403 = vpop.permute.xlu0 %402
        %v405 = vsel %vm400, %v403, 0.0
        %v406 = vadd.f32 %v396, %v405
        %v407 = vmul.f32 %v406, 0.125
        %v408 = vpack.c.bf16 %v407, %v407
        %v409 = vld [vmem:[%s2] sm:$0xf]
        %v410 = vld [vmem:[%s2 + $0x4] sm:$0xf]
        %v411 = vld [vmem:[%s2 + $0x8] sm:$0xf]
        %v412 = vld [vmem:[%s2 + $0xc] sm:$0xf]
        %v417 = vunpack.c.l.b16 %v409
        %v418 = vunpack.c.l.b16 %v410
        %v419 = vunpack.c.l.b16 %v411
        %v420 = vunpack.c.l.b16 %v412
        %v421 = vpack.c.b16 %v418, %v417
        %v422 = vpack.c.b16 %v420, %v419
        %vm425 = vcmask 261120
        %v427 = vsel %vm425, %v408, 0
        %429 = vmatprep.subr.bf16.mxu0 0
        %430 = vmatpush1.bf16.msra.mxu0 0
        %431 = vmatprep.subr.bf16.mxu0 0
        %432 = vmatpush1.bf16.msra.mxu0 0
        %433 = vmatprep.subr.bf16.mxu0 0
        %434 = vmatpush1.bf16.msra.mxu0 0
        %435 = vmatprep.subr.bf16.mxu0 0
        %436 = vmatpush1.bf16.msra.mxu0 0
        %437 = vmatprep.subr.bf16.mxu0 0
        %438 = vmatpush1.bf16.msra.mxu0 0
        %439 = vmatprep.subr.bf16.mxu0 0
        %440 = vmatpush1.bf16.msra.mxu0 0
        %441 = vmatprep.subr.bf16.mxu0 0
        %442 = vmatpush1.bf16.msra.mxu0 %v422
        %443 = vmatprep.subr.bf16.mxu0 0
        %444 = vmatpush1.bf16.msra.mxu0 %v421
        %445 = vmatprep.subr.bf16.mxu0 0
        %446 = vmatpush2.bf16.msra.mxu0 0
        %447 = vmatprep.subr.bf16.mxu0 0
        %448 = vmatpush2.bf16.msra.mxu0 0
        %449 = vmatprep.subr.bf16.mxu0 0
        %450 = vmatpush2.bf16.msra.mxu0 0
        %451 = vmatprep.subr.bf16.mxu0 0
        %452 = vmatpush2.bf16.msra.mxu0 0
        %453 = vmatprep.subr.bf16.mxu0 0
        %454 = vmatpush2.bf16.msra.mxu0 0
        %455 = vmatprep.subr.bf16.mxu0 0
        %456 = vmatpush2.bf16.msra.mxu0 0
        %457 = vmatprep.subr.bf16.mxu0 0
        %458 = vmatpush2.bf16.msra.mxu0 0
        %459 = vmatprep.subr.bf16.mxu0 0
        %460 = vmatpush2.bf16.msra.mxu0 0
        %461 = vmatprep.mubr.bf16.mxu0 0
        %462 = vmatmul.mubr.bf16.gmra.mxu0 %v427
        %v463 = vpop.f32.mrf.mxu0
        %v464 = vadd.f32 0.0, %v463
        %v465 = vpop.f32.mrf.mxu0
        %v466 = vpop.f32.mrf.mxu0
        %v467 = vpop.f32.mrf.mxu0
        %468 = vdwg.mxu0
        %v469 = vld [vmem:[#allocation2] sm:$0xff]
        %v470 = vld [vmem:[#allocation2 + $0x8] sm:$0xff]
        %v471 = vld [vmem:[#allocation2 + $0x10] sm:$0xff]
        %v472 = vld [vmem:[#allocation2 + $0x18] sm:$0xff]
        %v473 = vld [vmem:[#allocation2 + $0x20] sm:$0xff]
        %v474 = vld [vmem:[#allocation2 + $0x28] sm:$0xff]
        %v475 = vld [vmem:[#allocation2 + $0x30] sm:$0xff]
        %v476 = vld [vmem:[#allocation2 + $0x38] sm:$0xff]
        %v477 = vld [vmem:[#allocation2 + $0x40] sm:$0xff]
        %v478 = vld [vmem:[#allocation2 + $0x48] sm:$0xff]
        %v479 = vld [vmem:[#allocation2 + $0x50] sm:$0xff]
        %v480 = vld [vmem:[#allocation2 + $0x58] sm:$0xff]
        %v481 = vld [vmem:[#allocation2 + $0x60] sm:$0xff]
        %v482 = vld [vmem:[#allocation2 + $0x68] sm:$0xff]
        %v483 = vld [vmem:[#allocation2 + $0x70] sm:$0xff]
        %v484 = vld [vmem:[#allocation2 + $0x78] sm:$0xff]
        %v485 = vld [vmem:[%s4] sm:$0x1]
        %v487 = vlaneseq
        %v488 = vshrl.u32 %v487, 7
        %v489 = vsub.s32 0, %v488
        %v490 = vrot.slane %v485, %v489
        %492 = vmatprep.subr.mxu0 0.0
        %493 = vmatpush1.msra.mxu0 %v484
        %494 = vmatprep.subr.mxu0 0.0
        %495 = vmatpush1.msra.mxu0 %v483
        %496 = vmatprep.subr.mxu0 0.0
        %497 = vmatpush1.msra.mxu0 %v482
        %498 = vmatprep.subr.mxu0 0.0
        %499 = vmatpush1.msra.mxu0 %v481
        %500 = vmatprep.subr.mxu0 0.0
        %501 = vmatpush1.msra.mxu0 %v480
        %502 = vmatprep.subr.mxu0 0.0
        %503 = vmatpush1.msra.mxu0 %v479
        %504 = vmatprep.subr.mxu0 0.0
        %505 = vmatpush1.msra.mxu0 %v478
        %506 = vmatprep.subr.mxu0 0.0
        %507 = vmatpush1.msra.mxu0 %v477
        %508 = vmatprep.subr.mxu0 0.0
        %509 = vmatpush1.msra.mxu0 %v476
        %510 = vmatprep.subr.mxu0 0.0
        %511 = vmatpush1.msra.mxu0 %v475
        %512 = vmatprep.subr.mxu0 0.0
        %513 = vmatpush1.msra.mxu0 %v474
        %514 = vmatprep.subr.mxu0 0.0
        %515 = vmatpush1.msra.mxu0 %v473
        %516 = vmatprep.subr.mxu0 0.0
        %517 = vmatpush1.msra.mxu0 %v472
        %518 = vmatprep.subr.mxu0 0.0
        %519 = vmatpush1.msra.mxu0 %v471
        %520 = vmatprep.subr.mxu0 0.0
        %521 = vmatpush1.msra.mxu0 %v470
        %522 = vmatprep.subr.mxu0 0.0
        %523 = vmatpush1.msra.mxu0 %v469
        %524 = vmatprep.subr.mxu0 0.0
        %525 = vmatpush2.msra.mxu0 0.0
        %526 = vmatprep.subr.mxu0 0.0
        %527 = vmatpush2.msra.mxu0 0.0
        %528 = vmatprep.subr.mxu0 0.0
        %529 = vmatpush2.msra.mxu0 0.0
        %530 = vmatprep.subr.mxu0 0.0
        %531 = vmatpush2.msra.mxu0 0.0
        %532 = vmatprep.subr.mxu0 0.0
        %533 = vmatpush2.msra.mxu0 0.0
        %534 = vmatprep.subr.mxu0 0.0
        %535 = vmatpush2.msra.mxu0 0.0
        %536 = vmatprep.subr.mxu0 0.0
        %537 = vmatpush2.msra.mxu0 0.0
        %538 = vmatprep.subr.mxu0 0.0
        %539 = vmatpush2.msra.mxu0 0.0
        %540 = vmatprep.subr.mxu0 0.0
        %541 = vmatpush2.msra.mxu0 0.0
        %542 = vmatprep.subr.mxu0 0.0
        %543 = vmatpush2.msra.mxu0 0.0
        %544 = vmatprep.subr.mxu0 0.0
        %545 = vmatpush2.msra.mxu0 0.0
        %546 = vmatprep.subr.mxu0 0.0
        %547 = vmatpush2.msra.mxu0 0.0
        %548 = vmatprep.subr.mxu0 0.0
        %549 = vmatpush2.msra.mxu0 0.0
        %550 = vmatprep.subr.mxu0 0.0
        %551 = vmatpush2.msra.mxu0 0.0
        %552 = vmatprep.subr.mxu0 0.0
        %553 = vmatpush2.msra.mxu0 0.0
        %554 = vmatprep.subr.mxu0 0.0
        %555 = vmatpush2.msra.mxu0 0.0
        %556 = vmatprep.mubr.f32.mxu0 0.0
        %557 = vmatmul.mubr.f32.gmra.mxu0 %v464
        %v558 = vpop.f32.mrf.mxu0
        %v559 = vadd.f32 %v490, %v558
        %v560 = vpop.f32.mrf.mxu0
        %561 = vdwg.mxu0
        %v562 = vmax.f32 %v559, 0.0
        %v563 = vld [vmem:[#allocation5] sm:$0xff]
        %v564 = vld [vmem:[#allocation5 + $0x8] sm:$0xff]
        %v565 = vld [vmem:[#allocation5 + $0x10] sm:$0xff]
        %v566 = vld [vmem:[#allocation5 + $0x18] sm:$0xff]
        %v567 = vld [vmem:[#allocation5 + $0x20] sm:$0xff]
        %v568 = vld [vmem:[#allocation5 + $0x28] sm:$0xff]
        %v569 = vld [vmem:[#allocation5 + $0x30] sm:$0xff]
        %v570 = vld [vmem:[#allocation5 + $0x38] sm:$0xff]
        %v571 = vld [vmem:[#allocation5 + $0x40] sm:$0xff]
        %v572 = vld [vmem:[#allocation5 + $0x48] sm:$0xff]
        %v573 = vld [vmem:[#allocation5 + $0x50] sm:$0xff]
        %v574 = vld [vmem:[#allocation5 + $0x58] sm:$0xff]
        %v575 = vld [vmem:[#allocation5 + $0x60] sm:$0xff]
        %v576 = vld [vmem:[#allocation5 + $0x68] sm:$0xff]
        %v577 = vld [vmem:[#allocation5 + $0x70] sm:$0xff]
        %v578 = vld [vmem:[#allocation5 + $0x78] sm:$0xff]
        %v579 = vld [vmem:[%s6] sm:$0x1]
        %v581 = vlaneseq
        %v582 = vshrl.u32 %v581, 7
        %v583 = vsub.s32 0, %v582
        %v584 = vrot.slane %v579, %v583
        %586 = vmatprep.subr.mxu0 0.0
        %587 = vmatpush1.msra.mxu0 %v578
        %588 = vmatprep.subr.mxu0 0.0
        %589 = vmatpush1.msra.mxu0 %v577
        %590 = vmatprep.subr.mxu0 0.0
        %591 = vmatpush1.msra.mxu0 %v576
        %592 = vmatprep.subr.mxu0 0.0
        %593 = vmatpush1.msra.mxu0 %v575
        %594 = vmatprep.subr.mxu0 0.0
        %595 = vmatpush1.msra.mxu0 %v574
        %596 = vmatprep.subr.mxu0 0.0
        %597 = vmatpush1.msra.mxu0 %v573
        %598 = vmatprep.subr.mxu0 0.0
        %599 = vmatpush1.msra.mxu0 %v572
        %600 = vmatprep.subr.mxu0 0.0
        %601 = vmatpush1.msra.mxu0 %v571
        %602 = vmatprep.subr.mxu0 0.0
        %603 = vmatpush1.msra.mxu0 %v570
        %604 = vmatprep.subr.mxu0 0.0
        %605 = vmatpush1.msra.mxu0 %v569
        %606 = vmatprep.subr.mxu0 0.0
        %607 = vmatpush1.msra.mxu0 %v568
        %608 = vmatprep.subr.mxu0 0.0
        %609 = vmatpush1.msra.mxu0 %v567
        %610 = vmatprep.subr.mxu0 0.0
        %611 = vmatpush1.msra.mxu0 %v566
        %612 = vmatprep.subr.mxu0 0.0
        %613 = vmatpush1.msra.mxu0 %v565
        %614 = vmatprep.subr.mxu0 0.0
        %615 = vmatpush1.msra.mxu0 %v564
        %616 = vmatprep.subr.mxu0 0.0
        %617 = vmatpush1.msra.mxu0 %v563
        %618 = vmatprep.subr.mxu0 0.0
        %619 = vmatpush2.msra.mxu0 0.0
        %620 = vmatprep.subr.mxu0 0.0
        %621 = vmatpush2.msra.mxu0 0.0
        %622 = vmatprep.subr.mxu0 0.0
        %623 = vmatpush2.msra.mxu0 0.0
        %624 = vmatprep.subr.mxu0 0.0
        %625 = vmatpush2.msra.mxu0 0.0
        %626 = vmatprep.subr.mxu0 0.0
        %627 = vmatpush2.msra.mxu0 0.0
        %628 = vmatprep.subr.mxu0 0.0
        %629 = vmatpush2.msra.mxu0 0.0
        %630 = vmatprep.subr.mxu0 0.0
        %631 = vmatpush2.msra.mxu0 0.0
        %632 = vmatprep.subr.mxu0 0.0
        %633 = vmatpush2.msra.mxu0 0.0
        %634 = vmatprep.subr.mxu0 0.0
        %635 = vmatpush2.msra.mxu0 0.0
        %636 = vmatprep.subr.mxu0 0.0
        %637 = vmatpush2.msra.mxu0 0.0
        %638 = vmatprep.subr.mxu0 0.0
        %639 = vmatpush2.msra.mxu0 0.0
        %640 = vmatprep.subr.mxu0 0.0
        %641 = vmatpush2.msra.mxu0 0.0
        %642 = vmatprep.subr.mxu0 0.0
        %643 = vmatpush2.msra.mxu0 0.0
        %644 = vmatprep.subr.mxu0 0.0
        %645 = vmatpush2.msra.mxu0 0.0
        %646 = vmatprep.subr.mxu0 0.0
        %647 = vmatpush2.msra.mxu0 0.0
        %648 = vmatprep.subr.mxu0 0.0
        %649 = vmatpush2.msra.mxu0 0.0
        %650 = vmatprep.mubr.f32.mxu0 0.0
        %651 = vmatmul.mubr.f32.gmra.mxu0 %v562
        %v652 = vpop.f32.mrf.mxu0
        %v653 = vadd.f32 %v584, %v652
        %v654 = vpop.f32.mrf.mxu0
        %655 = vdwg.mxu0
        %656 = vst [vmem:[%s312] sm:$0xff] %v653
        %s657 = sand.u32 %s188, 1
        %s658 = scalar_lea.sflag [#allocation4], %s657
        %s659 = sand.u32 %s188, 1
        %s660 = smul.addr %s659, 8
        %s661 = scalar_lea.vmem [#allocation7], %s660
        // Predicated region
        $region57: #{tpu_custom_call.1} parent=47 // pred_check
          %p662 = pneg %p198
        $region58: #{tpu_custom_call.1} parent=47 // pred_check_branch
          %664 = sbr.rel (%p662) target = $region60
        $region59: #{tpu_custom_call.1} parent=47 // pred_region
          %s666 = ssub.s32 128, 128
          %667 = vsyncadd %s658, %s666
          %s668 = smul.addr %s23, 128
          %s669 = scalar_lea.hbm %s7, %s668
          %s671 = sshll.u32 %s661, 4
          %s672 = int_to_ptr.vmem [resolvable:$true] %s671
          %674 = dma.vmem_to_hbm [thread:$0]  %s672, 128, %s669, %s658
        $region60: #{tpu_custom_call.1} parent=47 // pred_fallthru
          _
      $region48: #{tpu_custom_call.1} parent=5 // pred_fallthru
        _
      %p675 = scmp.le.s32.totalorder 2, %s18
      // Predicated region
      $region61: #{tpu_custom_call.1} parent=5 // pred_check
        %p676 = pneg %p675
      $region62: #{tpu_custom_call.1} parent=5 // pred_check_branch
        %678 = sbr.rel (%p676) target = $region64
      $region63: #{tpu_custom_call.1} parent=5 // pred_region
        %s679 = ssub.s32 %s18, 2
        // Predicated region
        $region65: #{tpu_custom_call.1} parent=63 // pred_check
          %p680 = pneg %p204
        $region66: #{tpu_custom_call.1} parent=63 // pred_check_branch
          %682 = sbr.rel (%p680) target = $region68
        $region67: #{tpu_custom_call.1} parent=63 // pred_region
          %s683 = sand.u32 %s189, 1
          %s684 = scalar_lea.sflag [#allocation4], %s683
          %s685 = sand.u32 %s189, 1
          %s686 = smul.addr %s685, 8
          %s687 = scalar_lea.vmem [#allocation7], %s686
          %688 = dma.done %s684, 128
        $region68: #{tpu_custom_call.1} parent=63 // pred_fallthru
          _
      $region64: #{tpu_custom_call.1} parent=5 // pred_fallthru
        _
    $region6: #{tpu_custom_call.1} parent=1 // loop_footer
      %s22 = sadd.s32 1, %s18
    $region7: #{tpu_custom_call.1} parent=1 // loop_footer_branch
      %17 = sbr.rel target = $region3
    $region8: #{tpu_custom_call.1} parent=1 // loop_exit
      _
    %689 = vsyncpa [#allocation3], 1
    %s690 = scalar_lea.sflag [#allocation3], 1
    %691 = vsyncpa %s690, 1
    %692 = vsyncpa [#allocation6], 1
    %693 = vsyncpa [#allocation4], 1
    %s694 = scalar_lea.sflag [#allocation4], 1
    %695 = vsyncpa %s694, 1

</llo_original>
